<compile_context>
chip_gen: v6e
topology: v6e:2x2x1
jax: 0.10.0
libtpu: 0.0.40
codegen_flags: <defaults>
</compile_context>

<pallas_src>
import numpy as np
import jax
import jax.numpy as jnp
from jax.experimental import pallas as pl
from jax.experimental.pallas import tpu as pltpu

# ---- DecoderNN config: output_size=(2, 67, 8), batch_size=2, dense=[32, 64],
#      conv_levels=2, channels=[4, 1], kernels=[(3, 5), (2, 4)], latent_size=6 ----
BATCH = 2
LATENT = 6
DENSE = [32, 64]              # latent -> 32 -> 64, ReLU after every Linear
CHANNELS = [1, 4, 1]          # channels.insert(0, 1): 1 -> 4 -> 1
KERNELS = [(3, 5), (2, 4)]    # stride=1 transposed convs: 64x1 -> 66x5 -> 67x8
MAX_GAME_LEN = 67
EMB_DIM = 8

H0 = DENSE[-1]                # 64  dense output, reshaped to (B, 1, 64, 1)
K1H, K1W = KERNELS[0]         # 3, 5
K2H, K2W = KERNELS[1]         # 2, 4
H1, W1 = H0 + K1H - 1, K1W    # 66, 5   conv1 output
H2, W2 = H1 + K2H - 1, W1 + K2W - 1   # 67, 8  conv2 output
OUT = H2 * W2                 # 536  flat conv-stack output per sample
OUT_PAD = 640                 # padded to a multiple of 128 lanes (full-width vst)


# ------------------------------ fused kernel -----------------------------------
def _fused_decoder_kernel(x_ref, w1_ref, b1_ref, w2_ref, b2_ref, m_ref, bm_ref, o_ref):
    # ---- dense stack: (B,6) -> (B,32) -> (B,64), ReLU after each ----
    h = jnp.dot(x_ref[...], w1_ref[...], preferred_element_type=jnp.float32) + b1_ref[...]
    h = jnp.maximum(h, 0.0)
    y = jnp.dot(h, w2_ref[...], preferred_element_type=jnp.float32) + b2_ref[...]
    y = jnp.maximum(y, 0.0)                       # (B, 64) == reshape (B,1,64,1)

    # ---- both ConvTranspose2d layers folded into one matmul (precomputed M) ----
    # (B, 64) @ (64, 640) + (1, 640) -> (B, 640); first 536 cols = flat (67, 8) output.
    o_ref[...] = jnp.dot(y, m_ref[...], preferred_element_type=jnp.float32) + bm_ref[...]


_VMEM = pl.BlockSpec(memory_space=pltpu.MemorySpace.VMEM)

_fused_call = pl.pallas_call(
    _fused_decoder_kernel,
    out_shape=jax.ShapeDtypeStruct((BATCH, OUT_PAD), jnp.float32),  # lane-dense, 128-aligned
    in_specs=[_VMEM] * 7,      # x, w1, b1, w2, b2, M, bM -- all resident in VMEM
    out_specs=_VMEM,
)


# -------------------------------- full forward ---------------------------------
@jax.jit
def decoder_forward(x, params):
    out = _fused_call(x, params["w1"], params["b1"], params["w2"], params["b2"],
                      params["M"], params["bM"])
    # Drop the lane padding and reshape to NCHW: 4 KB of layout plumbing, one glue op.
    return out[:, :OUT].reshape(BATCH, 1, MAX_GAME_LEN, EMB_DIM)


# --------------------------- conv-transpose (numpy) -----------------------------
def _conv_transpose2d(x, w, b):
    # x: (B, Cin, H, W); w: (Cin, Cout, KH, KW); b: (Cout,) or None  (stride=1)
    B, Cin, H, W = x.shape
    _, Cout, KH, KW = w.shape
    out = np.zeros((B, Cout, H + KH - 1, W + KW - 1), np.float32)
    for kh in range(KH):
        for kw in range(KW):
            out[:, :, kh:kh + H, kw:kw + W] += np.einsum(
                "bihw,io->bohw", x, w[:, :, kh, kw])
    if b is not None:
        out += b[None, :, None, None]
    return out


# ------------------------------ numpy reference ---------------------------------
def decoder_forward_ref(x, params):
    x = np.asarray(x, np.float32)
    h = np.maximum(x @ np.asarray(params["w1"]) + np.asarray(params["b1"]), 0.0)
    y = np.maximum(h @ np.asarray(params["w2"]) + np.asarray(params["b2"]), 0.0)
    y = y.reshape(BATCH, 1, -1, 1)
    for (w, b) in params["convs"]:
        y = _conv_transpose2d(y, np.asarray(w), np.asarray(b))
    return y.reshape(BATCH, 1, MAX_GAME_LEN, EMB_DIM)


# ------------------------------- init & main ------------------------------------
def init_params(key):
    ks = jax.random.split(key, 8)
    s = 0.1
    params = {
        "w1": s * jax.random.normal(ks[0], (LATENT, DENSE[0]), jnp.float32),
        "b1": s * jax.random.normal(ks[1], (1, DENSE[0]), jnp.float32),
        "w2": s * jax.random.normal(ks[2], (DENSE[0], DENSE[1]), jnp.float32),
        "b2": s * jax.random.normal(ks[3], (1, DENSE[1]), jnp.float32),
        "convs": [],
    }
    kidx = 4
    for i, (kh, kw) in enumerate(KERNELS):
        cin, cout = CHANNELS[i], CHANNELS[i + 1]
        w = s * jax.random.normal(ks[kidx], (cin, cout, kh, kw), jnp.float32)
        b = s * jax.random.normal(ks[kidx + 1], (cout,), jnp.float32)
        params["convs"].append((w, b))
        kidx += 2

    # ---- Fold both ConvTranspose2d layers + biases into one (64, 536) operator ----
    # The conv stack is linear in the dense output, so:
    #   flat_out = y @ M + bM   where M[i] = convs(e_i) (no bias), bM = convs(0) (with bias).
    convs_np = [(np.asarray(w, np.float32), np.asarray(b, np.float32))
                for (w, b) in params["convs"]]
    basis = np.eye(H0, dtype=np.float32).reshape(H0, 1, H0, 1)   # 64 unit inputs as a batch
    m = basis
    for (w, _) in convs_np:
        m = _conv_transpose2d(m, w, None)
    m = m.reshape(H0, OUT)                                       # (64, 536), h-major/w-minor

    bm = np.zeros((1, 1, H0, 1), np.float32)
    for (w, b) in convs_np:
        bm = _conv_transpose2d(bm, w, b)
    bm = bm.reshape(1, OUT)                                      # (1, 536)

    m_pad = np.zeros((H0, OUT_PAD), np.float32)
    m_pad[:, :OUT] = m
    bm_pad = np.zeros((1, OUT_PAD), np.float32)
    bm_pad[:, :OUT] = bm
    params["M"] = jnp.asarray(m_pad)
    params["bM"] = jnp.asarray(bm_pad)
    return params


if __name__ == "__main__":
    key = jax.random.PRNGKey(0)
    pkey, xkey = jax.random.split(key)
    params = init_params(pkey)
    x = jax.random.normal(xkey, (BATCH, LATENT), jnp.float32)

    out = jax.block_until_ready(decoder_forward(x, params))
    assert out.shape == (BATCH, 1, MAX_GAME_LEN, EMB_DIM)

    ref = decoder_forward_ref(x, params)
    np.testing.assert_allclose(np.asarray(out), ref, rtol=1e-4, atol=1e-4)
    print("KERNEL_OK")
</pallas_src>

<mosaic_0001>
module attributes {stable_mosaic.version = 11 : i64} {
  func.func @_fused_decoder_kernel(%arg0: memref<2x6xf32, #tpu.memory_space<vmem>>, %arg1: memref<6x32xf32, #tpu.memory_space<vmem>>, %arg2: memref<1x32xf32, #tpu.memory_space<vmem>>, %arg3: memref<32x64xf32, #tpu.memory_space<vmem>>, %arg4: memref<1x64xf32, #tpu.memory_space<vmem>>, %arg5: memref<64x640xf32, #tpu.memory_space<vmem>>, %arg6: memref<1x640xf32, #tpu.memory_space<vmem>>, %arg7: memref<2x640xf32, #tpu.memory_space<vmem>>) attributes {dimension_semantics = [], scalar_prefetch = 0 : i64, scratch_operands = 0 : i64, tpu.core_type = #tpu.core_type<tc>} {
    %c0 = arith.constant 0 : index
    %c0_0 = arith.constant 0 : index
    %0 = vector.load %arg0[%c0, %c0_0] : memref<2x6xf32, #tpu.memory_space<vmem>>, vector<2x6xf32>
    %c0_1 = arith.constant 0 : index
    %c0_2 = arith.constant 0 : index
    %1 = vector.load %arg1[%c0_1, %c0_2] : memref<6x32xf32, #tpu.memory_space<vmem>>, vector<6x32xf32>
    %cst = arith.constant dense<0.000000e+00> : vector<2x32xf32>
    %2 = tpu.matmul %0, %1, %cst {dimension_numbers = #tpu.dot_dimension_numbers<[1], [0], [0], [1], [0, 0, 1, 1], [], []>} : vector<2x6xf32>, vector<6x32xf32>, vector<2x32xf32> -> vector<2x32xf32>
    %c0_3 = arith.constant 0 : index
    %c0_4 = arith.constant 0 : index
    %3 = vector.load %arg2[%c0_3, %c0_4] : memref<1x32xf32, #tpu.memory_space<vmem>>, vector<1x32xf32>
    %4 = vector.broadcast %3 : vector<1x32xf32> to vector<2x32xf32>
    %5 = arith.addf %2, %4 : vector<2x32xf32>
    %cst_5 = arith.constant 0.000000e+00 : f32
    %6 = vector.broadcast %cst_5 : f32 to vector<2x32xf32>
    %7 = arith.maximumf %5, %6 : vector<2x32xf32>
    %c0_6 = arith.constant 0 : index
    %c0_7 = arith.constant 0 : index
    %8 = vector.load %arg3[%c0_6, %c0_7] : memref<32x64xf32, #tpu.memory_space<vmem>>, vector<32x64xf32>
    %cst_8 = arith.constant dense<0.000000e+00> : vector<2x64xf32>
    %9 = tpu.matmul %7, %8, %cst_8 {dimension_numbers = #tpu.dot_dimension_numbers<[1], [0], [0], [1], [0, 0, 1, 1], [], []>} : vector<2x32xf32>, vector<32x64xf32>, vector<2x64xf32> -> vector<2x64xf32>
    %c0_9 = arith.constant 0 : index
    %c0_10 = arith.constant 0 : index
    %10 = vector.load %arg4[%c0_9, %c0_10] : memref<1x64xf32, #tpu.memory_space<vmem>>, vector<1x64xf32>
    %11 = vector.broadcast %10 : vector<1x64xf32> to vector<2x64xf32>
    %12 = arith.addf %9, %11 : vector<2x64xf32>
    %cst_11 = arith.constant 0.000000e+00 : f32
    %13 = vector.broadcast %cst_11 : f32 to vector<2x64xf32>
    %14 = arith.maximumf %12, %13 : vector<2x64xf32>
    %c0_12 = arith.constant 0 : index
    %c0_13 = arith.constant 0 : index
    %15 = vector.load %arg5[%c0_12, %c0_13] : memref<64x640xf32, #tpu.memory_space<vmem>>, vector<64x640xf32>
    %cst_14 = arith.constant dense<0.000000e+00> : vector<2x640xf32>
    %16 = tpu.matmul %14, %15, %cst_14 {dimension_numbers = #tpu.dot_dimension_numbers<[1], [0], [0], [1], [0, 0, 1, 1], [], []>} : vector<2x64xf32>, vector<64x640xf32>, vector<2x640xf32> -> vector<2x640xf32>
    %c0_15 = arith.constant 0 : index
    %c0_16 = arith.constant 0 : index
    %17 = vector.load %arg6[%c0_15, %c0_16] : memref<1x640xf32, #tpu.memory_space<vmem>>, vector<1x640xf32>
    %18 = vector.broadcast %17 : vector<1x640xf32> to vector<2x640xf32>
    %19 = arith.addf %16, %18 : vector<2x640xf32>
    %c0_17 = arith.constant 0 : index
    %c0_18 = arith.constant 0 : index
    %20 = vector.load %arg7[%c0_17, %c0_18] : memref<2x640xf32, #tpu.memory_space<vmem>>, vector<2x640xf32>
    tpu.vector_store %arg7[%c0_17, %c0_18], %19 {strides = array<i32>} : memref<2x640xf32, #tpu.memory_space<vmem>>, vector<2x640xf32>,
    return
  }
}

</mosaic_0001>

<llo_original>
// kernel: decoder_forward.1
$region0: #{decoder_forward.1}
  #allocation0 [shape = 'u32[]', space=smem, size = 0x4, offset = 0x4, fixed_abs, tag = 'smem constant byte address 0x4 - core index']
  #allocation1 [shape = 'u32[144,128]{1,0:T(1,128)}', space=vmem, size = 0x12000, scoped, tag = 'internal scratch']
  %s0 = inlined_call_operand.hbm [shape: f32[2,6], index: 0, kind: input, shape index: {}]
  %s1 = inlined_call_operand.vmem [shape: f32[6,32], index: 1, kind: input, shape index: {}]
  %s2 = inlined_call_operand.vmem [shape: f32[1,32], index: 2, kind: input, shape index: {}]
  %s3 = inlined_call_operand.hbm [shape: f32[32,64], index: 3, kind: input, shape index: {}]
  %s4 = inlined_call_operand.hbm [shape: f32[1,64], index: 4, kind: input, shape index: {}]
  %s5 = inlined_call_operand.hbm [shape: f32[64,640], index: 5, kind: input, shape index: {}]
  %s6 = inlined_call_operand.hbm [shape: f32[1,640], index: 6, kind: input, shape index: {}]
  %s7 = inlined_call_operand.vmem [shape: f32[2,640], index: 7, kind: output, shape index: {}]
  %s8 = sld [smem:[#allocation0]]
  $region58: #{decoder_forward.1} parent=0
    _
  %s10 = ssub.s32 1, %s8
  %s11 = scalar_select 0, %s10, %s8
  $region1: #{decoder_forward.1} parent=0
    #allocation2 [shape = 'u8[1024]{0}', space=vmem, size = 0x400, scoped, tag = 'input window, operand 0, single buffered']
    #allocation3 [shape = 's32[1]{0}', space=sflag, size = 0x4, scoped, tag = 'scoped memory for decoder_forward.1']
    #allocation4 [shape = 'u8[16384]{0}', space=vmem, size = 0x4000, scoped, tag = 'input window, operand 3, single buffered']
    #allocation5 [shape = 's32[1]{0}', space=sflag, size = 0x4, scoped, tag = 'scoped memory for decoder_forward.1']
    #allocation6 [shape = 'u8[512]{0}', space=vmem, size = 0x400, scoped, tag = 'input window, operand 4, single buffered']
    #allocation7 [shape = 'u8[163840]{0}', space=vmem, size = 0x28000, scoped, tag = 'input window, operand 5, single buffered']
    #allocation8 [shape = 's32[1]{0}', space=sflag, size = 0x4, scoped, tag = 'scoped memory for decoder_forward.1']
    #allocation9 [shape = 'u8[2560]{0}', space=vmem, size = 0xc00, scoped, tag = 'input window, operand 6, single buffered']
    %12 = vsyncpa [#allocation3], 0
    %13 = vsyncpa [#allocation5], 0
    %14 = vsyncpa [#allocation8], 0
    // Predicated region
    $region2: #{decoder_forward.1} parent=1 // pred_check
      _
    $region3: #{decoder_forward.1} parent=1 // pred_check_branch
      %16 = sbr.rel (0) target = $region5
    $region4: #{decoder_forward.1} parent=1 // pred_region
      %s18 = ssub.s32 32, 32
      %19 = vsyncadd [#allocation3], %s18
      %s21 = sshll.u32 [#allocation2], 4
      %s22 = int_to_ptr.vmem [resolvable:$true] %s21
      %24 = dma.hbm_to_vmem [thread:$0]  %s0, 32, %s22, [#allocation3]
    $region5: #{decoder_forward.1} parent=1 // pred_fallthru
      _
    // Predicated region
    $region6: #{decoder_forward.1} parent=1 // pred_check
      _
    $region7: #{decoder_forward.1} parent=1 // pred_check_branch
      %26 = sbr.rel (0) target = $region9
    $region8: #{decoder_forward.1} parent=1 // pred_region
      _
    $region9: #{decoder_forward.1} parent=1 // pred_fallthru
      _
    // Predicated region
    $region10: #{decoder_forward.1} parent=1 // pred_check
      _
    $region11: #{decoder_forward.1} parent=1 // pred_check_branch
      %28 = sbr.rel (0) target = $region13
    $region12: #{decoder_forward.1} parent=1 // pred_region
      _
    $region13: #{decoder_forward.1} parent=1 // pred_fallthru
      _
    // Predicated region
    $region14: #{decoder_forward.1} parent=1 // pred_check
      _
    $region15: #{decoder_forward.1} parent=1 // pred_check_branch
      %30 = sbr.rel (0) target = $region17
    $region16: #{decoder_forward.1} parent=1 // pred_region
      %s32 = ssub.s32 512, 512
      %33 = vsyncadd [#allocation5], %s32
      %s34 = sshll.u32 [#allocation4], 4
      %s35 = int_to_ptr.vmem [resolvable:$true] %s34
      %40 = dma.hbm_to_vmem [thread:$0]  %s3, 512, %s35, [#allocation5], 128, 128, 8
    $region17: #{decoder_forward.1} parent=1 // pred_fallthru
      _
    // Predicated region
    $region18: #{decoder_forward.1} parent=1 // pred_check
      _
    $region19: #{decoder_forward.1} parent=1 // pred_check_branch
      %42 = sbr.rel (0) target = $region21
    $region20: #{decoder_forward.1} parent=1 // pred_region
      %s44 = ssub.s32 16, 16
      %45 = vsyncadd [#allocation5], %s44
      %s47 = sshll.u32 [#allocation6], 4
      %s48 = int_to_ptr.vmem [resolvable:$true] %s47
      %50 = dma.hbm_to_vmem [thread:$0]  %s4, 16, %s48, [#allocation5]
    $region21: #{decoder_forward.1} parent=1 // pred_fallthru
      _
    // Predicated region
    $region22: #{decoder_forward.1} parent=1 // pred_check
      _
    $region23: #{decoder_forward.1} parent=1 // pred_check_branch
      %52 = sbr.rel (0) target = $region25
    $region24: #{decoder_forward.1} parent=1 // pred_region
      %s54 = ssub.s32 5120, 5120
      %55 = vsyncadd [#allocation8], %s54
      %s56 = sshll.u32 [#allocation7], 4
      %s57 = int_to_ptr.vmem [resolvable:$true] %s56
      %62 = dma.hbm_to_vmem [thread:$0]  %s5, 5120, %s57, [#allocation8], 640, 640, 40
    $region25: #{decoder_forward.1} parent=1 // pred_fallthru
      _
    // Predicated region
    $region26: #{decoder_forward.1} parent=1 // pred_check
      _
    $region27: #{decoder_forward.1} parent=1 // pred_check_branch
      %64 = sbr.rel (0) target = $region29
    $region28: #{decoder_forward.1} parent=1 // pred_region
      %s66 = ssub.s32 80, 80
      %67 = vsyncadd [#allocation8], %s66
      %s69 = sshll.u32 [#allocation9], 4
      %s70 = int_to_ptr.vmem [resolvable:$true] %s69
      %72 = dma.hbm_to_vmem [thread:$0]  %s6, 80, %s70, [#allocation8]
    $region29: #{decoder_forward.1} parent=1 // pred_fallthru
      _
    // Predicated region
    $region30: #{decoder_forward.1} parent=1 // pred_check
      _
    $region31: #{decoder_forward.1} parent=1 // pred_check_branch
      %74 = sbr.rel (0) target = $region33
    $region32: #{decoder_forward.1} parent=1 // pred_region
      %75 = dma.done [#allocation3], 32
    $region33: #{decoder_forward.1} parent=1 // pred_fallthru
      _
    // Predicated region
    $region34: #{decoder_forward.1} parent=1 // pred_check
      _
    $region35: #{decoder_forward.1} parent=1 // pred_check_branch
      %77 = sbr.rel (0) target = $region37
    $region36: #{decoder_forward.1} parent=1 // pred_region
      %78 = dma.done [#allocation5], 512
    $region37: #{decoder_forward.1} parent=1 // pred_fallthru
      _
    // Predicated region
    $region38: #{decoder_forward.1} parent=1 // pred_check
      _
    $region39: #{decoder_forward.1} parent=1 // pred_check_branch
      %80 = sbr.rel (0) target = $region41
    $region40: #{decoder_forward.1} parent=1 // pred_region
      %81 = dma.done [#allocation5], 16
    $region41: #{decoder_forward.1} parent=1 // pred_fallthru
      _
    // Predicated region
    $region42: #{decoder_forward.1} parent=1 // pred_check
      _
    $region43: #{decoder_forward.1} parent=1 // pred_check_branch
      %83 = sbr.rel (0) target = $region45
    $region44: #{decoder_forward.1} parent=1 // pred_region
      %84 = dma.done [#allocation8], 5120
    $region45: #{decoder_forward.1} parent=1 // pred_fallthru
      _
    // Predicated region
    $region46: #{decoder_forward.1} parent=1 // pred_check
      _
    $region47: #{decoder_forward.1} parent=1 // pred_check_branch
      %86 = sbr.rel (0) target = $region49
    $region48: #{decoder_forward.1} parent=1 // pred_region
      %87 = dma.done [#allocation8], 80
    $region49: #{decoder_forward.1} parent=1 // pred_fallthru
      _
    %v88 = vld [vmem:[#allocation2] sm:$0x3]
    %v89 = vld [vmem:[%s1] sm:$0x3f]
    %v90 = vld [vmem:[%s2] sm:$0x1]
    %v92 = vlaneseq
    %v93 = vshrl.u32 %v92, 7
    %v94 = vsub.s32 0, %v93
    %v95 = vrot.slane %v90, %v94
    %vm97 = vcmask 48128
    %v99 = vsel %vm97, %v88, 0
    %vm101 = vcmask 1045504
    %v103 = vsel %vm101, %v89, 0
    %105 = vmatprep.subr.mxu0 0.0
    %106 = vmatpush1.msra.mxu0 0.0
    %107 = vmatprep.subr.mxu0 0.0
    %108 = vmatpush1.msra.mxu0 0.0
    %109 = vmatprep.subr.mxu0 0.0
    %110 = vmatpush1.msra.mxu0 0.0
    %111 = vmatprep.subr.mxu0 0.0
    %112 = vmatpush1.msra.mxu0 0.0
    %113 = vmatprep.subr.mxu0 0.0
    %114 = vmatpush1.msra.mxu0 0.0
    %115 = vmatprep.subr.mxu0 0.0
    %116 = vmatpush1.msra.mxu0 0.0
    %117 = vmatprep.subr.mxu0 0.0
    %118 = vmatpush1.msra.mxu0 0.0
    %119 = vmatprep.subr.mxu0 0.0
    %120 = vmatpush1.msra.mxu0 0.0
    %121 = vmatprep.subr.mxu0 0.0
    %122 = vmatpush1.msra.mxu0 0.0
    %123 = vmatprep.subr.mxu0 0.0
    %124 = vmatpush1.msra.mxu0 0.0
    %125 = vmatprep.subr.mxu0 0.0
    %126 = vmatpush1.msra.mxu0 0.0
    %127 = vmatprep.subr.mxu0 0.0
    %128 = vmatpush1.msra.mxu0 0.0
    %129 = vmatprep.subr.mxu0 0.0
    %130 = vmatpush1.msra.mxu0 0.0
    %131 = vmatprep.subr.mxu0 0.0
    %132 = vmatpush1.msra.mxu0 0.0
    %133 = vmatprep.subr.mxu0 0.0
    %134 = vmatpush1.msra.mxu0 0.0
    %135 = vmatprep.subr.mxu0 0.0
    %136 = vmatpush1.msra.mxu0 %v103
    %137 = vmatprep.subr.mxu0 0.0
    %138 = vmatpush2.msra.mxu0 0.0
    %139 = vmatprep.subr.mxu0 0.0
    %140 = vmatpush2.msra.mxu0 0.0
    %141 = vmatprep.subr.mxu0 0.0
    %142 = vmatpush2.msra.mxu0 0.0
    %143 = vmatprep.subr.mxu0 0.0
    %144 = vmatpush2.msra.mxu0 0.0
    %145 = vmatprep.subr.mxu0 0.0
    %146 = vmatpush2.msra.mxu0 0.0
    %147 = vmatprep.subr.mxu0 0.0
    %148 = vmatpush2.msra.mxu0 0.0
    %149 = vmatprep.subr.mxu0 0.0
    %150 = vmatpush2.msra.mxu0 0.0
    %151 = vmatprep.subr.mxu0 0.0
    %152 = vmatpush2.msra.mxu0 0.0
    %153 = vmatprep.subr.mxu0 0.0
    %154 = vmatpush2.msra.mxu0 0.0
    %155 = vmatprep.subr.mxu0 0.0
    %156 = vmatpush2.msra.mxu0 0.0
    %157 = vmatprep.subr.mxu0 0.0
    %158 = vmatpush2.msra.mxu0 0.0
    %159 = vmatprep.subr.mxu0 0.0
    %160 = vmatpush2.msra.mxu0 0.0
    %161 = vmatprep.subr.mxu0 0.0
    %162 = vmatpush2.msra.mxu0 0.0
    %163 = vmatprep.subr.mxu0 0.0
    %164 = vmatpush2.msra.mxu0 0.0
    %165 = vmatprep.subr.mxu0 0.0
    %166 = vmatpush2.msra.mxu0 0.0
    %167 = vmatprep.subr.mxu0 0.0
    %168 = vmatpush2.msra.mxu0 0.0
    %169 = vmatprep.mubr.f32.mxu0 0.0
    %170 = vmatmul.mubr.f32.gmra.mxu0 %v99
    %v171 = vpop.f32.mrf.mxu0
    %v172 = vadd.f32 %v95, %v171
    %v173 = vpop.f32.mrf.mxu0
    %174 = vdwg.mxu0
    %v175 = vmax.f32 %v172, 0.0
    %v176 = vld [vmem:[#allocation4] sm:$0xff]
    %v177 = vld [vmem:[#allocation4 + $0x8] sm:$0xff]
    %v178 = vld [vmem:[#allocation4 + $0x10] sm:$0xff]
    %v179 = vld [vmem:[#allocation4 + $0x18] sm:$0xff]
    %v180 = vld [vmem:[#allocation6] sm:$0x1]
    %v182 = vlaneseq
    %v183 = vshrl.u32 %v182, 7
    %v184 = vsub.s32 0, %v183
    %v185 = vrot.slane %v180, %v184
    %vm187 = vcmask 261120
    %v189 = vsel %vm187, %v175, 0
    %191 = vmatprep.subr.mxu0 0.0
    %192 = vmatpush1.msra.mxu0 0.0
    %193 = vmatprep.subr.mxu0 0.0
    %194 = vmatpush1.msra.mxu0 0.0
    %195 = vmatprep.subr.mxu0 0.0
    %196 = vmatpush1.msra.mxu0 0.0
    %197 = vmatprep.subr.mxu0 0.0
    %198 = vmatpush1.msra.mxu0 0.0
    %199 = vmatprep.subr.mxu0 0.0
    %200 = vmatpush1.msra.mxu0 0.0
    %201 = vmatprep.subr.mxu0 0.0
    %202 = vmatpush1.msra.mxu0 0.0
    %203 = vmatprep.subr.mxu0 0.0
    %204 = vmatpush1.msra.mxu0 0.0
    %205 = vmatprep.subr.mxu0 0.0
    %206 = vmatpush1.msra.mxu0 0.0
    %207 = vmatprep.subr.mxu0 0.0
    %208 = vmatpush1.msra.mxu0 0.0
    %209 = vmatprep.subr.mxu0 0.0
    %210 = vmatpush1.msra.mxu0 0.0
    %211 = vmatprep.subr.mxu0 0.0
    %212 = vmatpush1.msra.mxu0 0.0
    %213 = vmatprep.subr.mxu0 0.0
    %214 = vmatpush1.msra.mxu0 0.0
    %215 = vmatprep.subr.mxu0 0.0
    %216 = vmatpush1.msra.mxu0 %v179
    %217 = vmatprep.subr.mxu0 0.0
    %218 = vmatpush1.msra.mxu0 %v178
    %219 = vmatprep.subr.mxu0 0.0
    %220 = vmatpush1.msra.mxu0 %v177
    %221 = vmatprep.subr.mxu0 0.0
    %222 = vmatpush1.msra.mxu0 %v176
    %223 = vmatprep.subr.mxu0 0.0
    %224 = vmatpush2.msra.mxu0 0.0
    %225 = vmatprep.subr.mxu0 0.0
    %226 = vmatpush2.msra.mxu0 0.0
    %227 = vmatprep.subr.mxu0 0.0
    %228 = vmatpush2.msra.mxu0 0.0
    %229 = vmatprep.subr.mxu0 0.0
    %230 = vmatpush2.msra.mxu0 0.0
    %231 = vmatprep.subr.mxu0 0.0
    %232 = vmatpush2.msra.mxu0 0.0
    %233 = vmatprep.subr.mxu0 0.0
    %234 = vmatpush2.msra.mxu0 0.0
    %235 = vmatprep.subr.mxu0 0.0
    %236 = vmatpush2.msra.mxu0 0.0
    %237 = vmatprep.subr.mxu0 0.0
    %238 = vmatpush2.msra.mxu0 0.0
    %239 = vmatprep.subr.mxu0 0.0
    %240 = vmatpush2.msra.mxu0 0.0
    %241 = vmatprep.subr.mxu0 0.0
    %242 = vmatpush2.msra.mxu0 0.0
    %243 = vmatprep.subr.mxu0 0.0
    %244 = vmatpush2.msra.mxu0 0.0
    %245 = vmatprep.subr.mxu0 0.0
    %246 = vmatpush2.msra.mxu0 0.0
    %247 = vmatprep.subr.mxu0 0.0
    %248 = vmatpush2.msra.mxu0 0.0
    %249 = vmatprep.subr.mxu0 0.0
    %250 = vmatpush2.msra.mxu0 0.0
    %251 = vmatprep.subr.mxu0 0.0
    %252 = vmatpush2.msra.mxu0 0.0
    %253 = vmatprep.subr.mxu0 0.0
    %254 = vmatpush2.msra.mxu0 0.0
    %255 = vmatprep.mubr.f32.mxu0 0.0
    %256 = vmatmul.mubr.f32.gmra.mxu0 %v189
    %v257 = vpop.f32.mrf.mxu0
    %v258 = vadd.f32 %v185, %v257
    %v259 = vpop.f32.mrf.mxu0
    %260 = vdwg.mxu0
    %v261 = vmax.f32 %v258, 0.0
    %v262 = vld [vmem:[#allocation7] sm:$0xff]
    %v263 = vld [vmem:[#allocation7 + $0x8] sm:$0xff]
    %v264 = vld [vmem:[#allocation7 + $0x10] sm:$0xff]
    %v265 = vld [vmem:[#allocation7 + $0x18] sm:$0xff]
    %v266 = vld [vmem:[#allocation7 + $0x20] sm:$0xff]
    %v267 = vld [vmem:[#allocation7 + $0x28] sm:$0xff]
    %v268 = vld [vmem:[#allocation7 + $0x30] sm:$0xff]
    %v269 = vld [vmem:[#allocation7 + $0x38] sm:$0xff]
    %v270 = vld [vmem:[#allocation7 + $0x40] sm:$0xff]
    %v271 = vld [vmem:[#allocation7 + $0x48] sm:$0xff]
    %v272 = vld [vmem:[#allocation7 + $0x50] sm:$0xff]
    %v273 = vld [vmem:[#allocation7 + $0x58] sm:$0xff]
    %v274 = vld [vmem:[#allocation7 + $0x60] sm:$0xff]
    %v275 = vld [vmem:[#allocation7 + $0x68] sm:$0xff]
    %v276 = vld [vmem:[#allocation7 + $0x70] sm:$0xff]
    %v277 = vld [vmem:[#allocation7 + $0x78] sm:$0xff]
    %v278 = vld [vmem:[#allocation7 + $0x80] sm:$0xff]
    %v279 = vld [vmem:[#allocation7 + $0x88] sm:$0xff]
    %v280 = vld [vmem:[#allocation7 + $0x90] sm:$0xff]
    %v281 = vld [vmem:[#allocation7 + $0x98] sm:$0xff]
    %v282 = vld [vmem:[#allocation7 + $0xa0] sm:$0xff]
    %v283 = vld [vmem:[#allocation7 + $0xa8] sm:$0xff]
    %v284 = vld [vmem:[#allocation7 + $0xb0] sm:$0xff]
    %v285 = vld [vmem:[#allocation7 + $0xb8] sm:$0xff]
    %v286 = vld [vmem:[#allocation7 + $0xc0] sm:$0xff]
    %v287 = vld [vmem:[#allocation7 + $0xc8] sm:$0xff]
    %v288 = vld [vmem:[#allocation7 + $0xd0] sm:$0xff]
    %v289 = vld [vmem:[#allocation7 + $0xd8] sm:$0xff]
    %v290 = vld [vmem:[#allocation7 + $0xe0] sm:$0xff]
    %v291 = vld [vmem:[#allocation7 + $0xe8] sm:$0xff]
    %v292 = vld [vmem:[#allocation7 + $0xf0] sm:$0xff]
    %v293 = vld [vmem:[#allocation7 + $0xf8] sm:$0xff]
    %v294 = vld [vmem:[#allocation7 + $0x100] sm:$0xff]
    %v295 = vld [vmem:[#allocation7 + $0x108] sm:$0xff]
    %v296 = vld [vmem:[#allocation7 + $0x110] sm:$0xff]
    %v297 = vld [vmem:[#allocation7 + $0x118] sm:$0xff]
    %v298 = vld [vmem:[#allocation7 + $0x120] sm:$0xff]
    %v299 = vld [vmem:[#allocation7 + $0x128] sm:$0xff]
    %v300 = vld [vmem:[#allocation7 + $0x130] sm:$0xff]
    %v301 = vld [vmem:[#allocation7 + $0x138] sm:$0xff]
    %v302 = vld [vmem:[#allocation9] sm:$0x1f]
    %v304 = vlaneseq
    %v305 = vshrl.u32 %v304, 7
    %v306 = vsub.s32 0, %v305
    %v307 = vrot.slane %v302, %v306
    %v308 = vlaneseq
    %v309 = vshrl.u32 %v308, 7
    %v310 = vsub.s32 1, %v309
    %v311 = vrot.slane %v302, %v310
    %v312 = vlaneseq
    %v313 = vshrl.u32 %v312, 7
    %v314 = vsub.s32 2, %v313
    %v315 = vrot.slane %v302, %v314
    %v316 = vlaneseq
    %v317 = vshrl.u32 %v316, 7
    %v318 = vsub.s32 3, %v317
    %v319 = vrot.slane %v302, %v318
    %v320 = vlaneseq
    %v321 = vshrl.u32 %v320, 7
    %v322 = vsub.s32 4, %v321
    %v323 = vrot.slane %v302, %v322
    %vm329 = vcmask 523264
    %v331 = vsel %vm329, %v261, 0
    %333 = vmatprep.subr.mxu0 0.0
    %334 = vmatpush1.msra.mxu0 0.0
    %335 = vmatprep.subr.mxu0 0.0
    %336 = vmatpush1.msra.mxu0 0.0
    %337 = vmatprep.subr.mxu0 0.0
    %338 = vmatpush1.msra.mxu0 0.0
    %339 = vmatprep.subr.mxu0 0.0
    %340 = vmatpush1.msra.mxu0 0.0
    %341 = vmatprep.subr.mxu0 0.0
    %342 = vmatpush1.msra.mxu0 0.0
    %343 = vmatprep.subr.mxu0 0.0
    %344 = vmatpush1.msra.mxu0 0.0
    %345 = vmatprep.subr.mxu0 0.0
    %346 = vmatpush1.msra.mxu0 0.0
    %347 = vmatprep.subr.mxu0 0.0
    %348 = vmatpush1.msra.mxu0 0.0
    %349 = vmatprep.subr.mxu0 %v298
    %350 = vmatpush1.msra.mxu0 %v297
    %351 = vmatprep.subr.mxu0 %v293
    %352 = vmatpush1.msra.mxu0 %v292
    %353 = vmatprep.subr.mxu0 %v288
    %354 = vmatpush1.msra.mxu0 %v287
    %355 = vmatprep.subr.mxu0 %v283
    %356 = vmatpush1.msra.mxu0 %v282
    %357 = vmatprep.subr.mxu0 %v278
    %358 = vmatpush1.msra.mxu0 %v277
    %359 = vmatprep.subr.mxu0 %v273
    %360 = vmatpush1.msra.mxu0 %v272
    %361 = vmatprep.subr.mxu0 %v268
    %362 = vmatpush1.msra.mxu0 %v267
    %363 = vmatprep.subr.mxu0 %v263
    %364 = vmatpush1.msra.mxu0 %v262
    %365 = vmatprep.subr.mxu0 0.0
    %366 = vmatpush2.msra.mxu0 0.0
    %367 = vmatprep.subr.mxu0 0.0
    %368 = vmatpush2.msra.mxu0 0.0
    %369 = vmatprep.subr.mxu0 0.0
    %370 = vmatpush2.msra.mxu0 0.0
    %371 = vmatprep.subr.mxu0 0.0
    %372 = vmatpush2.msra.mxu0 0.0
    %373 = vmatprep.subr.mxu0 0.0
    %374 = vmatpush2.msra.mxu0 0.0
    %375 = vmatprep.subr.mxu0 0.0
    %376 = vmatpush2.msra.mxu0 0.0
    %377 = vmatprep.subr.mxu0 0.0
    %378 = vmatpush2.msra.mxu0 0.0
    %379 = vmatprep.subr.mxu0 0.0
    %380 = vmatpush2.msra.mxu0 0.0
    %381 = vmatprep.subr.mxu0 0.0
    %382 = vmatpush2.msra.mxu0 0.0
    %383 = vmatprep.subr.mxu0 0.0
    %384 = vmatpush2.msra.mxu0 0.0
    %385 = vmatprep.subr.mxu0 0.0
    %386 = vmatpush2.msra.mxu0 0.0
    %387 = vmatprep.subr.mxu0 0.0
    %388 = vmatpush2.msra.mxu0 0.0
    %389 = vmatprep.subr.mxu0 0.0
    %390 = vmatpush2.msra.mxu0 0.0
    %391 = vmatprep.subr.mxu0 0.0
    %392 = vmatpush2.msra.mxu0 0.0
    %393 = vmatprep.subr.mxu0 0.0
    %394 = vmatpush2.msra.mxu0 0.0
    %395 = vmatprep.subr.mxu0 0.0
    %396 = vmatpush2.msra.mxu0 0.0
    %397 = vmatprep.mubr.f32.mxu0 0.0
    %398 = vmatmul.mubr.f32.gmra.mxu0 %v331
    %v399 = vpop.f32.mrf.mxu0
    %v400 = vadd.f32 %v307, %v399
    %v401 = vpop.f32.mrf.mxu0
    %v402 = vadd.f32 %v311, %v401
    %403 = vdwg.mxu0
    %404 = vmatprep.subr.mxu0 0.0
    %405 = vmatpush1.msra.mxu0 0.0
    %406 = vmatprep.subr.mxu0 0.0
    %407 = vmatpush1.msra.mxu0 0.0
    %408 = vmatprep.subr.mxu0 0.0
    %409 = vmatpush1.msra.mxu0 0.0
    %410 = vmatprep.subr.mxu0 0.0
    %411 = vmatpush1.msra.mxu0 0.0
    %412 = vmatprep.subr.mxu0 0.0
    %413 = vmatpush1.msra.mxu0 0.0
    %414 = vmatprep.subr.mxu0 0.0
    %415 = vmatpush1.msra.mxu0 0.0
    %416 = vmatprep.subr.mxu0 0.0
    %417 = vmatpush1.msra.mxu0 0.0
    %418 = vmatprep.subr.mxu0 0.0
    %419 = vmatpush1.msra.mxu0 0.0
    %420 = vmatprep.subr.mxu0 %v300
    %421 = vmatpush1.msra.mxu0 %v299
    %422 = vmatprep.subr.mxu0 %v295
    %423 = vmatpush1.msra.mxu0 %v294
    %424 = vmatprep.subr.mxu0 %v290
    %425 = vmatpush1.msra.mxu0 %v289
    %426 = vmatprep.subr.mxu0 %v285
    %427 = vmatpush1.msra.mxu0 %v284
    %428 = vmatprep.subr.mxu0 %v280
    %429 = vmatpush1.msra.mxu0 %v279
    %430 = vmatprep.subr.mxu0 %v275
    %431 = vmatpush1.msra.mxu0 %v274
    %432 = vmatprep.subr.mxu0 %v270
    %433 = vmatpush1.msra.mxu0 %v269
    %434 = vmatprep.subr.mxu0 %v265
    %435 = vmatpush1.msra.mxu0 %v264
    %436 = vmatprep.subr.mxu0 0.0
    %437 = vmatpush2.msra.mxu0 0.0
    %438 = vmatprep.subr.mxu0 0.0
    %439 = vmatpush2.msra.mxu0 0.0
    %440 = vmatprep.subr.mxu0 0.0
    %441 = vmatpush2.msra.mxu0 0.0
    %442 = vmatprep.subr.mxu0 0.0
    %443 = vmatpush2.msra.mxu0 0.0
    %444 = vmatprep.subr.mxu0 0.0
    %445 = vmatpush2.msra.mxu0 0.0
    %446 = vmatprep.subr.mxu0 0.0
    %447 = vmatpush2.msra.mxu0 0.0
    %448 = vmatprep.subr.mxu0 0.0
    %449 = vmatpush2.msra.mxu0 0.0
    %450 = vmatprep.subr.mxu0 0.0
    %451 = vmatpush2.msra.mxu0 0.0
    %452 = vmatprep.subr.mxu0 0.0
    %453 = vmatpush2.msra.mxu0 0.0
    %454 = vmatprep.subr.mxu0 0.0
    %455 = vmatpush2.msra.mxu0 0.0
    %456 = vmatprep.subr.mxu0 0.0
    %457 = vmatpush2.msra.mxu0 0.0
    %458 = vmatprep.subr.mxu0 0.0
    %459 = vmatpush2.msra.mxu0 0.0
    %460 = vmatprep.subr.mxu0 0.0
    %461 = vmatpush2.msra.mxu0 0.0
    %462 = vmatprep.subr.mxu0 0.0
    %463 = vmatpush2.msra.mxu0 0.0
    %464 = vmatprep.subr.mxu0 0.0
    %465 = vmatpush2.msra.mxu0 0.0
    %466 = vmatprep.subr.mxu0 0.0
    %467 = vmatpush2.msra.mxu0 0.0
    %468 = vmatprep.mubr.f32.mxu0 0.0
    %469 = vmatmul.mubr.f32.gmra.mxu0 %v331
    %v470 = vpop.f32.mrf.mxu0
    %v471 = vadd.f32 %v315, %v470
    %v472 = vpop.f32.mrf.mxu0
    %v473 = vadd.f32 %v319, %v472
    %474 = vdwg.mxu0
    %475 = vmatprep.subr.mxu0 0.0
    %476 = vmatpush1.msra.mxu0 0.0
    %477 = vmatprep.subr.mxu0 0.0
    %478 = vmatpush1.msra.mxu0 0.0
    %479 = vmatprep.subr.mxu0 0.0
    %480 = vmatpush1.msra.mxu0 0.0
    %481 = vmatprep.subr.mxu0 0.0
    %482 = vmatpush1.msra.mxu0 0.0
    %483 = vmatprep.subr.mxu0 0.0
    %484 = vmatpush1.msra.mxu0 0.0
    %485 = vmatprep.subr.mxu0 0.0
    %486 = vmatpush1.msra.mxu0 0.0
    %487 = vmatprep.subr.mxu0 0.0
    %488 = vmatpush1.msra.mxu0 0.0
    %489 = vmatprep.subr.mxu0 0.0
    %490 = vmatpush1.msra.mxu0 0.0
    %491 = vmatprep.subr.mxu0 0.0
    %492 = vmatpush1.msra.mxu0 %v301
    %493 = vmatprep.subr.mxu0 0.0
    %494 = vmatpush1.msra.mxu0 %v296
    %495 = vmatprep.subr.mxu0 0.0
    %496 = vmatpush1.msra.mxu0 %v291
    %497 = vmatprep.subr.mxu0 0.0
    %498 = vmatpush1.msra.mxu0 %v286
    %499 = vmatprep.subr.mxu0 0.0
    %500 = vmatpush1.msra.mxu0 %v281
    %501 = vmatprep.subr.mxu0 0.0
    %502 = vmatpush1.msra.mxu0 %v276
    %503 = vmatprep.subr.mxu0 0.0
    %504 = vmatpush1.msra.mxu0 %v271
    %505 = vmatprep.subr.mxu0 0.0
    %506 = vmatpush1.msra.mxu0 %v266
    %507 = vmatprep.subr.mxu0 0.0
    %508 = vmatpush2.msra.mxu0 0.0
    %509 = vmatprep.subr.mxu0 0.0
    %510 = vmatpush2.msra.mxu0 0.0
    %511 = vmatprep.subr.mxu0 0.0
    %512 = vmatpush2.msra.mxu0 0.0
    %513 = vmatprep.subr.mxu0 0.0
    %514 = vmatpush2.msra.mxu0 0.0
    %515 = vmatprep.subr.mxu0 0.0
    %516 = vmatpush2.msra.mxu0 0.0
    %517 = vmatprep.subr.mxu0 0.0
    %518 = vmatpush2.msra.mxu0 0.0
    %519 = vmatprep.subr.mxu0 0.0
    %520 = vmatpush2.msra.mxu0 0.0
    %521 = vmatprep.subr.mxu0 0.0
    %522 = vmatpush2.msra.mxu0 0.0
    %523 = vmatprep.subr.mxu0 0.0
    %524 = vmatpush2.msra.mxu0 0.0
    %525 = vmatprep.subr.mxu0 0.0
    %526 = vmatpush2.msra.mxu0 0.0
    %527 = vmatprep.subr.mxu0 0.0
    %528 = vmatpush2.msra.mxu0 0.0
    %529 = vmatprep.subr.mxu0 0.0
    %530 = vmatpush2.msra.mxu0 0.0
    %531 = vmatprep.subr.mxu0 0.0
    %532 = vmatpush2.msra.mxu0 0.0
    %533 = vmatprep.subr.mxu0 0.0
    %534 = vmatpush2.msra.mxu0 0.0
    %535 = vmatprep.subr.mxu0 0.0
    %536 = vmatpush2.msra.mxu0 0.0
    %537 = vmatprep.subr.mxu0 0.0
    %538 = vmatpush2.msra.mxu0 0.0
    %539 = vmatprep.mubr.f32.mxu0 0.0
    %540 = vmatmul.mubr.f32.gmra.mxu0 %v331
    %v541 = vpop.f32.mrf.mxu0
    %v542 = vadd.f32 %v323, %v541
    %v543 = vpop.f32.mrf.mxu0
    %544 = vdwg.mxu0
    %v550 = vcombine.low %v400, %v402
    %v551 = vcombine.low %v471, %v473
    %v553 = vunpack.c.l.s4 1983009808
    %v554 = vunpack.c.0.s8 %v553
    %v555 = vlaneseq
    %v556 = vshrl.u32 %v555, 7
    %v557 = vsub.s32 %v554, %v556
    %v558 = vrot.slane %v550, %v557
    %v560 = vunpack.c.l.s4 1983009808
    %v561 = vunpack.c.0.s8 %v560
    %v562 = vlaneseq
    %v563 = vshrl.u32 %v562, 7
    %v564 = vsub.s32 %v561, %v563
    %v565 = vrot.slane %v551, %v564
    %v566 = vcombine.low %v558, %v565
    %v568 = vunpack.c.l.s4 1983009808
    %v569 = vunpack.c.0.s8 %v568
    %v570 = vlaneseq
    %v571 = vshrl.u32 %v570, 7
    %v572 = vsub.s32 %v569, %v571
    %v573 = vrot.slane %v542, %v572
    %576 = vst [vmem:[%s7] sm:$0xff] %v566
    %577 = vst [vmem:[%s7 + $0x8] sm:$0x3] %v573
    // Predicated region
    $region50: #{decoder_forward.1} parent=1 // pred_check
      _
    $region51: #{decoder_forward.1} parent=1 // pred_check_branch
      %579 = sbr.rel (0) target = $region53
    $region52: #{decoder_forward.1} parent=1 // pred_region
      _
    $region53: #{decoder_forward.1} parent=1 // pred_fallthru
      _
    // Predicated region
    $region54: #{decoder_forward.1} parent=1 // pred_check
      _
    $region55: #{decoder_forward.1} parent=1 // pred_check_branch
      %581 = sbr.rel (0) target = $region57
    $region56: #{decoder_forward.1} parent=1 // pred_region
      _
    $region57: #{decoder_forward.1} parent=1 // pred_fallthru
      _
    %582 = vsyncpa [#allocation3], 1
    %583 = vsyncpa [#allocation5], 1
    %584 = vsyncpa [#allocation8], 1

</llo_original>
